<compile_context>
chip_gen: v5e
topology: v5e:2x2
jax: 0.10.0
libtpu: 0.0.40
codegen_flags: <defaults>
</compile_context>

<pallas_src>
import jax
import jax.numpy as jnp
from jax import lax
from jax.experimental import pallas as pl
from jax.experimental.pallas import tpu as pltpu


def _round_up(x, m):
    return ((x + m - 1) // m) * m


def _onehot_gather_kernel(lat_ref, idx_ref, out_ref):
    # lat_ref: VMEM (pool_size, dim_pad)  -- whole table, single-buffered
    # idx_ref: VMEM (tile, 1) int32       -- this grid step's row indices
    # out_ref: VMEM (tile, dim_pad)       -- this grid step's output rows
    tile = out_ref.shape[0]
    pool_size = lat_ref.shape[0]

    idx = idx_ref[...]                                                 # (tile, 1)
    pool_iota = lax.broadcasted_iota(jnp.int32, (tile, pool_size), 1)  # lane iota
    onehot = (idx == pool_iota).astype(lat_ref.dtype)                  # (tile, pool)

    # Exact selection: each one-hot row has a single 1.0, so the MXU matmul
    # reproduces the gathered rows (HIGHEST => full-precision f32 passes).
    out = jnp.dot(
        onehot,
        lat_ref[...],
        preferred_element_type=jnp.float32,
        precision=lax.Precision.HIGHEST,
    )
    out_ref[...] = out.astype(out_ref.dtype)


def _pick_tile(n, pool_size, dim_pad, itemsize, budget_bytes=48 * 1024 * 1024):
    """Largest row tile (multiple of 8, <= 1024) whose double-buffered output
    block plus the resident table fits a v7x-safe VMEM budget."""
    table_bytes = pool_size * dim_pad * itemsize
    n_pad8 = _round_up(max(n, 1), 8)
    for cand in (1024, 512, 256, 128, 64, 32, 16, 8):
        if cand > n_pad8:
            continue
        out_bytes = 2 * cand * dim_pad * itemsize   # double-buffered output
        idx_bytes = 2 * cand * 4                    # double-buffered indices
        if table_bytes + out_bytes + idx_bytes <= budget_bytes:
            return cand
    return 8


def latent_pool_forward(latents, indices, *, tile=None):
    """Pallas equivalent of LatentPool.forward: latents[indices]."""
    pool_size, latent_dim = latents.shape
    dtype = latents.dtype
    itemsize = jnp.dtype(dtype).itemsize

    # Lane-dense output: pad latent_dim up to a multiple of 128.
    dim_pad = _round_up(latent_dim, 128)
    lat_p = latents if dim_pad == latent_dim else jnp.pad(
        latents, ((0, 0), (0, dim_pad - latent_dim)))

    idx_flat = indices.reshape(-1).astype(jnp.int32)
    n = idx_flat.shape[0]

    if tile is None:
        tile = _pick_tile(n, pool_size, dim_pad, itemsize)
    tile = max(8, _round_up(int(tile), 8))

    n_pad = _round_up(max(n, 1), tile)
    idx_2d = jnp.pad(idx_flat, (0, n_pad - n)).reshape(n_pad, 1)

    # TODO(synk): for tables too large to keep resident in VMEM (notably on
    # v7x's 64 MiB), add a latent_dim-chunking grid axis or DMA rows from pl.ANY.
    vmem_need = (pool_size * dim_pad * itemsize
                 + 2 * tile * dim_pad * itemsize
                 + 2 * tile * 4)
    cp_kwargs = {"dimension_semantics": ("parallel",)}
    if vmem_need > 12 * 1024 * 1024:
        cp_kwargs["vmem_limit_bytes"] = min(vmem_need + (8 << 20), 100 << 20)

    out_flat = pl.pallas_call(
        _onehot_gather_kernel,
        out_shape=jax.ShapeDtypeStruct((n_pad, dim_pad), dtype),
        grid=(n_pad // tile,),
        in_specs=[
            # Whole latent table resident in VMEM, single-buffered.
            pl.BlockSpec(memory_space=pltpu.MemorySpace.VMEM),
            # Per-step row indices as a lane-thin VMEM block.
            pl.BlockSpec((tile, 1), lambda i: (i, 0)),
        ],
        out_specs=pl.BlockSpec((tile, dim_pad), lambda i: (i, 0)),
        compiler_params=pltpu.CompilerParams(**cp_kwargs),
    )(lat_p, idx_2d)

    out = out_flat[:n, :latent_dim]
    return out.reshape(*indices.shape, latent_dim)


if __name__ == "__main__":
    pool_size = 16
    latent_dim = 128
    batch, seq = 2, 8

    key = jax.random.PRNGKey(0)
    k_lat, k_idx = jax.random.split(key)

    # nn.Parameter(torch.zeros([pool_size, latent_dim])) would normally be
    # filled via .init(); use a deterministic random fill so the gather is
    # actually exercised.
    latents = jax.random.normal(k_lat, (pool_size, latent_dim), dtype=jnp.float32)
    indices = jax.random.randint(k_idx, (batch, seq), 0, pool_size, dtype=jnp.int32)

    out = latent_pool_forward(latents, indices)
    out = jax.block_until_ready(out)

    # reference: plain JAX gather (== PyTorch self.latents[indices])
    ref = jnp.take(latents, indices, axis=0)
    assert out.shape == (batch, seq, latent_dim), out.shape
    assert jnp.allclose(out, ref, rtol=0.0, atol=1e-6), "mismatch vs reference gather"

    print("KERNEL_OK")
</pallas_src>

<mosaic_0001>
module attributes {stable_mosaic.version = 11 : i64} {
  func.func @_onehot_gather_kernel(%arg0: i32, %arg1: memref<16x128xf32, #tpu.memory_space<vmem>>, %arg2: memref<16x1xi32, #tpu.memory_space<vmem>>, %arg3: memref<16x128xf32, #tpu.memory_space<vmem>>) attributes {dimension_semantics = [#tpu.dimension_semantics<parallel>], iteration_bounds = array<i64: 1>, scalar_prefetch = 0 : i64, scratch_operands = 0 : i64, tpu.core_type = #tpu.core_type<tc>, window_params = [{pipeline_mode = #tpu.pipeline_mode<synchronous>, transform_indices = @transform_0, window_bounds = array<i64: 16, 128>}, {transform_indices = @transform_1, window_bounds = array<i64: 16, 1>}, {transform_indices = @transform_2, window_bounds = array<i64: 16, 128>}]} {
    %c0 = arith.constant 0 : index
    %c0_0 = arith.constant 0 : index
    %0 = vector.load %arg2[%c0, %c0_0] : memref<16x1xi32, #tpu.memory_space<vmem>>, vector<16x1xi32>
    %1 = tpu.iota {dimensions = array<i32: 1>} : vector<16x16xi32>
    %2 = vector.broadcast %0 : vector<16x1xi32> to vector<16x16xi32>
    %3 = arith.cmpi eq, %2, %1 : vector<16x16xi32>
    %4 = arith.extui %3 : vector<16x16xi1> to vector<16x16xi32>
    %5 = arith.sitofp %4 : vector<16x16xi32> to vector<16x16xf32>
    %c0_1 = arith.constant 0 : index
    %c0_2 = arith.constant 0 : index
    %6 = vector.load %arg1[%c0_1, %c0_2] : memref<16x128xf32, #tpu.memory_space<vmem>>, vector<16x128xf32>
    %cst = arith.constant dense<0.000000e+00> : vector<16x128xf32>
    %7 = tpu.matmul %5, %6, %cst {dimension_numbers = #tpu.dot_dimension_numbers<[1], [0], [0], [1], [0, 0, 1, 1], [], []>, precision = #tpu.contract_precision<fp32>} : vector<16x16xf32>, vector<16x128xf32>, vector<16x128xf32> -> vector<16x128xf32>
    %c0_3 = arith.constant 0 : index
    %c0_4 = arith.constant 0 : index
    %8 = vector.load %arg3[%c0_3, %c0_4] : memref<16x128xf32, #tpu.memory_space<vmem>>, vector<16x128xf32>
    tpu.vector_store %arg3[%c0_3, %c0_4], %7 {strides = array<i32>} : memref<16x128xf32, #tpu.memory_space<vmem>>, vector<16x128xf32>,
    return
  }
  func.func @transform_0(%arg0: i32) -> (i32, i32) {
    %c0_i32 = arith.constant 0 : i32
    %c0_i32_0 = arith.constant 0 : i32
    %c0_i32_1 = arith.constant 0 : i32
    return %c0_i32, %c0_i32_0 : i32, i32
  }
  func.func @transform_1(%arg0: i32) -> (i32, i32) {
    %c0_i32 = arith.constant 0 : i32
    %c0_i32_0 = arith.constant 0 : i32
    return %arg0, %c0_i32 : i32, i32
  }
  func.func @transform_2(%arg0: i32) -> (i32, i32) {
    %c0_i32 = arith.constant 0 : i32
    %c0_i32_0 = arith.constant 0 : i32
    return %arg0, %c0_i32 : i32, i32
  }
}

</mosaic_0001>

<llo_original>
// kernel: tpu_custom_call.1
$region0: #{tpu_custom_call.1}
  #allocation0 [shape = 'u32[]', space=smem, size = 0x4, offset = 0x4, fixed_abs, tag = 'smem constant byte address 0x4 - core index']
  #allocation1 [shape = 'u32[72,128]{1,0:T(1,128)}', space=vmem, size = 0x9000, scoped, tag = 'internal scratch']
  %s0 = inlined_call_operand.vmem [shape: f32[16,128], index: 0, kind: input, shape index: {}]
  %s1 = inlined_call_operand.vmem [shape: s32[16,1], index: 1, kind: input, shape index: {}]
  %s2 = inlined_call_operand.hbm [shape: f32[16,128], index: 2, kind: output, shape index: {}]
  %s3 = sld [smem:[#allocation0]]
  $region18: #{tpu_custom_call.1} parent=0
    _
  %s5 = ssub.s32 1, %s3
  %s6 = scalar_select 0, %s5, %s3
  $region1: #{tpu_custom_call.1} parent=0
    #allocation2 [shape = 'u8[8192]{0}', space=vmem, size = 0x2000, scoped, tag = 'output window, operand 0, single buffered']
    #allocation3 [shape = 's32[1]{0}', space=sflag, size = 0x4, scoped, tag = 'scoped memory for tpu_custom_call.1']
    %7 = vsyncpa [#allocation3], 0
    // Predicated region
    $region2: #{tpu_custom_call.1} parent=1 // pred_check
      _
    $region3: #{tpu_custom_call.1} parent=1 // pred_check_branch
      %9 = sbr.rel (0) target = $region5
    $region4: #{tpu_custom_call.1} parent=1 // pred_region
      _
    $region5: #{tpu_custom_call.1} parent=1 // pred_fallthru
      _
    // Predicated region
    $region6: #{tpu_custom_call.1} parent=1 // pred_check
      _
    $region7: #{tpu_custom_call.1} parent=1 // pred_check_branch
      %11 = sbr.rel (0) target = $region9
    $region8: #{tpu_custom_call.1} parent=1 // pred_region
      _
    $region9: #{tpu_custom_call.1} parent=1 // pred_fallthru
      _
    %v12 = vld [vmem:[%s1] sm:$0xff]
    %v13 = vld [vmem:[%s1 + $0x8] sm:$0xff]
    %v14 = vlaneseq
    %v15 = vand.u32 %v14, 127
    %16 = vset.pattern.permute.xlu0 0
    %17 = vperm.xlu0 %16, %v12
    %v18 = vpop.permute.xlu0 %17
    %19 = vset.pattern.permute.xlu0 0
    %20 = vperm.xlu0 %19, %v13
    %v21 = vpop.permute.xlu0 %20
    %vm22 = vcmp.eq.s32.totalorder %v18, %v15
    %vm23 = vcmp.eq.s32.totalorder %v21, %v15
    %v24 = vsel %vm22, 1, 0
    %v25 = vsel %vm23, 1, 0
    %v26 = vcvt.s32.f32 %v24
    %v27 = vcvt.s32.f32 %v25
    %v28 = vld [vmem:[%s0] sm:$0xff]
    %v29 = vld [vmem:[%s0 + $0x8] sm:$0xff]
    %vm30 = vcmask 130048
    %v32 = vsel %vm30, %v26, 0
    %v35 = vsel %vm30, %v27, 0
    %37 = vmatpush.msra.mxu0 0.0
    %38 = vmatpush.msra.mxu0 0.0
    %39 = vmatpush.msra.mxu0 0.0
    %40 = vmatpush.msra.mxu0 0.0
    %41 = vmatpush.msra.mxu0 0.0
    %42 = vmatpush.msra.mxu0 0.0
    %43 = vmatpush.msra.mxu0 0.0
    %44 = vmatpush.msra.mxu0 0.0
    %45 = vmatpush.msra.mxu0 0.0
    %46 = vmatpush.msra.mxu0 0.0
    %47 = vmatpush.msra.mxu0 0.0
    %48 = vmatpush.msra.mxu0 0.0
    %49 = vmatpush.msra.mxu0 0.0
    %50 = vmatpush.msra.mxu0 0.0
    %v51 = vand.u32 %v29, 4294901760
    %52 = vmatpush.msra.mxu0 %v51
    %v53 = vand.u32 %v28, 4294901760
    %54 = vmatpush.msra.mxu0 %v53
    %v55 = vand.u32 %v32, 4294901760
    %v56 = vsub.f32 %v32, %v55
    %v57 = vand.u32 %v56, 4294901760
    %v58 = vsub.f32 %v56, %v57
    %v59 = vand.u32 %v58, 4294901760
    %60 = vmatmul.f32.gmra.mxu0 %v59
    %v61 = vpop.f32.mrf.mxu0
    %v62 = vadd.f32 0.0, %v61
    %v63 = vand.u32 %v35, 4294901760
    %v64 = vsub.f32 %v35, %v63
    %v65 = vand.u32 %v64, 4294901760
    %v66 = vsub.f32 %v64, %v65
    %v67 = vand.u32 %v66, 4294901760
    %68 = vmatmul.f32.gmra.mxu0 %v67
    %v69 = vpop.f32.mrf.mxu0
    %v70 = vadd.f32 0.0, %v69
    %71 = vdwg.mxu0
    %72 = vmatpush.msra.mxu0 0.0
    %73 = vmatpush.msra.mxu0 0.0
    %74 = vmatpush.msra.mxu0 0.0
    %75 = vmatpush.msra.mxu0 0.0
    %76 = vmatpush.msra.mxu0 0.0
    %77 = vmatpush.msra.mxu0 0.0
    %78 = vmatpush.msra.mxu0 0.0
    %79 = vmatpush.msra.mxu0 0.0
    %80 = vmatpush.msra.mxu0 0.0
    %81 = vmatpush.msra.mxu0 0.0
    %82 = vmatpush.msra.mxu0 0.0
    %83 = vmatpush.msra.mxu0 0.0
    %84 = vmatpush.msra.mxu0 0.0
    %85 = vmatpush.msra.mxu0 0.0
    %v86 = vand.u32 %v29, 4294901760
    %v87 = vsub.f32 %v29, %v86
    %v88 = vand.u32 %v87, 4294901760
    %v89 = vsub.f32 %v87, %v88
    %v90 = vand.u32 %v89, 4294901760
    %91 = vmatpush.msra.mxu0 %v90
    %v92 = vand.u32 %v28, 4294901760
    %v93 = vsub.f32 %v28, %v92
    %v94 = vand.u32 %v93, 4294901760
    %v95 = vsub.f32 %v93, %v94
    %v96 = vand.u32 %v95, 4294901760
    %97 = vmatpush.msra.mxu0 %v96
    %v98 = vand.u32 %v32, 4294901760
    %99 = vmatmul.f32.gmra.mxu0 %v98
    %v100 = vpop.f32.mrf.mxu0
    %v101 = vadd.f32 %v62, %v100
    %v102 = vand.u32 %v35, 4294901760
    %103 = vmatmul.f32.gmra.mxu0 %v102
    %v104 = vpop.f32.mrf.mxu0
    %v105 = vadd.f32 %v70, %v104
    %106 = vdwg.mxu0
    %107 = vmatpush.msra.mxu0 0.0
    %108 = vmatpush.msra.mxu0 0.0
    %109 = vmatpush.msra.mxu0 0.0
    %110 = vmatpush.msra.mxu0 0.0
    %111 = vmatpush.msra.mxu0 0.0
    %112 = vmatpush.msra.mxu0 0.0
    %113 = vmatpush.msra.mxu0 0.0
    %114 = vmatpush.msra.mxu0 0.0
    %115 = vmatpush.msra.mxu0 0.0
    %116 = vmatpush.msra.mxu0 0.0
    %117 = vmatpush.msra.mxu0 0.0
    %118 = vmatpush.msra.mxu0 0.0
    %119 = vmatpush.msra.mxu0 0.0
    %120 = vmatpush.msra.mxu0 0.0
    %v121 = vand.u32 %v29, 4294901760
    %v122 = vsub.f32 %v29, %v121
    %123 = vmatpush.msra.mxu0 %v122
    %v124 = vand.u32 %v28, 4294901760
    %v125 = vsub.f32 %v28, %v124
    %126 = vmatpush.msra.mxu0 %v125
    %v127 = vand.u32 %v32, 4294901760
    %v128 = vsub.f32 %v32, %v127
    %129 = vmatmul.f32.gmra.mxu0 %v128
    %v130 = vpop.f32.mrf.mxu0
    %v131 = vadd.f32 %v101, %v130
    %v132 = vand.u32 %v35, 4294901760
    %v133 = vsub.f32 %v35, %v132
    %134 = vmatmul.f32.gmra.mxu0 %v133
    %v135 = vpop.f32.mrf.mxu0
    %v136 = vadd.f32 %v105, %v135
    %137 = vdwg.mxu0
    %138 = vmatpush.msra.mxu0 0.0
    %139 = vmatpush.msra.mxu0 0.0
    %140 = vmatpush.msra.mxu0 0.0
    %141 = vmatpush.msra.mxu0 0.0
    %142 = vmatpush.msra.mxu0 0.0
    %143 = vmatpush.msra.mxu0 0.0
    %144 = vmatpush.msra.mxu0 0.0
    %145 = vmatpush.msra.mxu0 0.0
    %146 = vmatpush.msra.mxu0 0.0
    %147 = vmatpush.msra.mxu0 0.0
    %148 = vmatpush.msra.mxu0 0.0
    %149 = vmatpush.msra.mxu0 0.0
    %150 = vmatpush.msra.mxu0 0.0
    %151 = vmatpush.msra.mxu0 0.0
    %v152 = vand.u32 %v29, 4294901760
    %153 = vmatpush.msra.mxu0 %v152
    %v154 = vand.u32 %v28, 4294901760
    %155 = vmatpush.msra.mxu0 %v154
    %v156 = vand.u32 %v32, 4294901760
    %v157 = vsub.f32 %v32, %v156
    %v158 = vand.u32 %v157, 4294901760
    %159 = vmatmul.f32.gmra.mxu0 %v158
    %v160 = vpop.f32.mrf.mxu0
    %v161 = vadd.f32 %v131, %v160
    %v162 = vand.u32 %v35, 4294901760
    %v163 = vsub.f32 %v35, %v162
    %v164 = vand.u32 %v163, 4294901760
    %165 = vmatmul.f32.gmra.mxu0 %v164
    %v166 = vpop.f32.mrf.mxu0
    %v167 = vadd.f32 %v136, %v166
    %168 = vdwg.mxu0
    %169 = vmatpush.msra.mxu0 0.0
    %170 = vmatpush.msra.mxu0 0.0
    %171 = vmatpush.msra.mxu0 0.0
    %172 = vmatpush.msra.mxu0 0.0
    %173 = vmatpush.msra.mxu0 0.0
    %174 = vmatpush.msra.mxu0 0.0
    %175 = vmatpush.msra.mxu0 0.0
    %176 = vmatpush.msra.mxu0 0.0
    %177 = vmatpush.msra.mxu0 0.0
    %178 = vmatpush.msra.mxu0 0.0
    %179 = vmatpush.msra.mxu0 0.0
    %180 = vmatpush.msra.mxu0 0.0
    %181 = vmatpush.msra.mxu0 0.0
    %182 = vmatpush.msra.mxu0 0.0
    %v183 = vand.u32 %v29, 4294901760
    %v184 = vsub.f32 %v29, %v183
    %v185 = vand.u32 %v184, 4294901760
    %186 = vmatpush.msra.mxu0 %v185
    %v187 = vand.u32 %v28, 4294901760
    %v188 = vsub.f32 %v28, %v187
    %v189 = vand.u32 %v188, 4294901760
    %190 = vmatpush.msra.mxu0 %v189
    %v191 = vand.u32 %v32, 4294901760
    %192 = vmatmul.f32.gmra.mxu0 %v191
    %v193 = vpop.f32.mrf.mxu0
    %v194 = vadd.f32 %v161, %v193
    %v195 = vand.u32 %v35, 4294901760
    %196 = vmatmul.f32.gmra.mxu0 %v195
    %v197 = vpop.f32.mrf.mxu0
    %v198 = vadd.f32 %v167, %v197
    %199 = vdwg.mxu0
    %200 = vmatpush.msra.mxu0 0.0
    %201 = vmatpush.msra.mxu0 0.0
    %202 = vmatpush.msra.mxu0 0.0
    %203 = vmatpush.msra.mxu0 0.0
    %204 = vmatpush.msra.mxu0 0.0
    %205 = vmatpush.msra.mxu0 0.0
    %206 = vmatpush.msra.mxu0 0.0
    %207 = vmatpush.msra.mxu0 0.0
    %208 = vmatpush.msra.mxu0 0.0
    %209 = vmatpush.msra.mxu0 0.0
    %210 = vmatpush.msra.mxu0 0.0
    %211 = vmatpush.msra.mxu0 0.0
    %212 = vmatpush.msra.mxu0 0.0
    %213 = vmatpush.msra.mxu0 0.0
    %v214 = vand.u32 %v29, 4294901760
    %215 = vmatpush.msra.mxu0 %v214
    %v216 = vand.u32 %v28, 4294901760
    %217 = vmatpush.msra.mxu0 %v216
    %v218 = vand.u32 %v32, 4294901760
    %219 = vmatmul.f32.gmra.mxu0 %v218
    %v220 = vpop.f32.mrf.mxu0
    %v221 = vadd.f32 %v194, %v220
    %v222 = vand.u32 %v35, 4294901760
    %223 = vmatmul.f32.gmra.mxu0 %v222
    %v224 = vpop.f32.mrf.mxu0
    %v225 = vadd.f32 %v198, %v224
    %226 = vdwg.mxu0
    %227 = vst [vmem:[#allocation2] sm:$0xff] %v221
    %228 = vst [vmem:[#allocation2 + $0x8] sm:$0xff] %v225
    // Predicated region
    $region10: #{tpu_custom_call.1} parent=1 // pred_check
      _
    $region11: #{tpu_custom_call.1} parent=1 // pred_check_branch
      %230 = sbr.rel (0) target = $region13
    $region12: #{tpu_custom_call.1} parent=1 // pred_region
      %232 = vsyncadd [#allocation3], 0
      %s233 = sshll.u32 [#allocation2], 4
      %s234 = int_to_ptr.vmem [resolvable:$true] %s233
      %s235 = sshll.u32 %s2, 4
      %s236 = int_to_ptr.hbm [resolvable:$true] %s235
      %241 = dma.vmem_to_hbm [thread:$0]  %s234, 256, %s236, [#allocation3], 128, 128, 8
    $region13: #{tpu_custom_call.1} parent=1 // pred_fallthru
      _
    // Predicated region
    $region14: #{tpu_custom_call.1} parent=1 // pred_check
      _
    $region15: #{tpu_custom_call.1} parent=1 // pred_check_branch
      %243 = sbr.rel (0) target = $region17
    $region16: #{tpu_custom_call.1} parent=1 // pred_region
      %245 = dma.done [#allocation3], 256
    $region17: #{tpu_custom_call.1} parent=1 // pred_fallthru
      _
    %246 = vsyncpa [#allocation3], 1

</llo_original>
